<compile_context>
chip_gen: v7x
topology: tpu7x:2x2x1
jax: 0.10.0
libtpu: 0.0.40
codegen_flags: <defaults>
</compile_context>

<pallas_src>
import jax
import jax.numpy as jnp
from jax import lax
from jax.experimental import pallas as pl
from jax.experimental.pallas import tpu as pltpu

START_IDX = 1
END_IDX = 2


def _round_up(x, m):
    return (x + m - 1) // m * m


# ---------------------------------------------------------------------------
# Kernel 1: batched linear  out = x @ w + b  (f32 accumulation, parallel grid).
# Used for (a) the fused input/gate projection of all T+1 steps and (b) word_fc
# over all Bp*T hidden states.  Weights/bias arrive already padded & cast.
# ---------------------------------------------------------------------------
def _linear_kernel(x_ref, w_ref, b_ref, o_ref):
    acc = jnp.dot(x_ref[...], w_ref[...],
                  preferred_element_type=jnp.float32) + b_ref[...]
    o_ref[...] = acc.astype(o_ref.dtype)


def pallas_linear(x, w, b, *, out_dtype=jnp.float32,
                  compute_dtype=jnp.bfloat16, tm=256, tn=512):
    """x: (M, K); w: (K, Np) pre-padded/cast; b: (1, Np) f32 -> (M, Np) out_dtype."""
    M, K = x.shape
    Kw, Np = w.shape
    assert Kw == K and b.shape == (1, Np)

    if Np % 128 == 0:
        tn = min(tn, Np)
        while Np % tn:
            tn -= 128
    else:
        tn = Np                      # small/unpadded N: one full-width block

    tm = min(tm, _round_up(M, 8))
    Mp = _round_up(M, tm)

    xp = x.astype(compute_dtype)
    if Mp != M:
        xp = jnp.pad(xp, ((0, Mp - M), (0, 0)))

    out = pl.pallas_call(
        _linear_kernel,
        out_shape=jax.ShapeDtypeStruct((Mp, Np), out_dtype),
        grid_spec=pltpu.PrefetchScalarGridSpec(
            num_scalar_prefetch=0,
            grid=(Mp // tm, Np // tn),
            in_specs=[
                pl.BlockSpec((tm, K), lambda i, j: (i, 0)),
                pl.BlockSpec((K, tn), lambda i, j: (0, j)),
                pl.BlockSpec((1, tn), lambda i, j: (0, j)),
            ],
            out_specs=pl.BlockSpec((tm, tn), lambda i, j: (i, j)),
        ),
        compiler_params=pltpu.CompilerParams(
            dimension_semantics=("parallel", "parallel")),
    )(xp, w.astype(compute_dtype), b)
    if Mp != M:
        out = out[:M]
    return out


# ---------------------------------------------------------------------------
# Kernel 2: sequential LSTM recurrence, SINGLE pallas_call invocation.
#   * one fused (Bp, H) @ (H, 4H) matmul per step (f32 accumulation)
#   * xproj streamed from HBM per step via manual double-buffered DMA
#   * whh resident in VMEM; h/c state kept f32 in VMEM scratch
#   * step 0 is the image step (zero initial state); word-step hidden states
#     (steps 1..T) are written to hout rows 0..T-1 (no later slicing needed).
# ---------------------------------------------------------------------------
def _make_recurrent_kernel(T, H, compute_dtype):
    f32 = jnp.float32

    def sigmoid(x):                       # one EUP op (tanh) per sigmoid
        return 0.5 * jnp.tanh(0.5 * x) + 0.5

    def kernel(xproj_hbm, whh_ref, hout_ref, xbuf, sem, h_sc, c_sc):
        h_sc[...] = jnp.zeros_like(h_sc)
        c_sc[...] = jnp.zeros_like(c_sc)

        # Prime the DMA for step 0 (the image-vector step).
        pltpu.make_async_copy(xproj_hbm.at[0], xbuf.at[0], sem.at[0]).start()

        def step(t, carry):
            slot = lax.rem(t, 2)
            pltpu.make_async_copy(xproj_hbm.at[t], xbuf.at[slot],
                                  sem.at[slot]).wait()

            @pl.when(t < T)
            def _prefetch():
                nxt = 1 - slot
                pltpu.make_async_copy(xproj_hbm.at[t + 1], xbuf.at[nxt],
                                      sem.at[nxt]).start()

            gates = xbuf[slot].astype(f32) + jnp.dot(
                h_sc[...].astype(compute_dtype), whh_ref[...],
                preferred_element_type=f32)                     # (Bp, 4H) f32

            i_g = sigmoid(gates[:, 0 * H:1 * H])
            f_g = sigmoid(gates[:, 1 * H:2 * H])
            g_g = jnp.tanh(gates[:, 2 * H:3 * H])
            o_g = sigmoid(gates[:, 3 * H:4 * H])

            c_new = f_g * c_sc[...] + i_g * g_g
            h_new = o_g * jnp.tanh(c_new)
            h_sc[...] = h_new
            c_sc[...] = c_new

            @pl.when(t > 0)
            def _store():
                hout_ref[jnp.maximum(t - 1, 0)] = h_new.astype(hout_ref.dtype)

            return carry

        lax.fori_loop(0, T + 1, step, 0)

    return kernel


def _run_recurrence(xproj, whh_4h, T, Bp, H, compute_dtype):
    """xproj: (T+1, Bp, 4H) compute_dtype; whh_4h: (H, 4H) compute_dtype."""
    G4 = 4 * H
    itemsize = jnp.dtype(compute_dtype).itemsize
    needed = (2 * Bp * G4 * itemsize          # xproj double buffer (scratch)
              + 2 * H * G4 * itemsize         # whh (2 pipeline buffers)
              + 2 * T * Bp * H * itemsize     # hout block
              + 2 * Bp * H * 4)               # h/c f32 scratch
    vmem_limit = int(min(max(2 * needed + (1 << 20), 32 << 20), 48 << 20))

    return pl.pallas_call(
        _make_recurrent_kernel(T, H, compute_dtype),
        out_shape=jax.ShapeDtypeStruct((T, Bp, H), compute_dtype),
        grid_spec=pltpu.PrefetchScalarGridSpec(
            num_scalar_prefetch=0,
            grid=(1,),
            in_specs=[
                pl.BlockSpec(memory_space=pl.ANY),        # xproj stays in HBM
                pl.BlockSpec((H, G4), lambda i: (0, 0)),  # whh, VMEM resident
            ],
            out_specs=pl.BlockSpec((T, Bp, H), lambda i: (0, 0, 0)),
            scratch_shapes=[
                pltpu.VMEM((2, Bp, G4), compute_dtype),   # xproj double buffer
                pltpu.SemaphoreType.DMA((2,)),
                pltpu.VMEM((Bp, H), jnp.float32),         # h state
                pltpu.VMEM((Bp, H), jnp.float32),         # c state
            ],
        ),
        compiler_params=pltpu.CompilerParams(
            dimension_semantics=("arbitrary",),
            vmem_limit_bytes=vmem_limit),
    )(xproj, whh_4h)


# ---------------------------------------------------------------------------
# One-time weight preparation (re-layout / fuse / pad / cast).  Hoisted out of
# the forward so weights are not re-padded (extra HBM pass) on every call.
# ---------------------------------------------------------------------------
def prepare_params(params, compute_dtype=jnp.bfloat16):
    f32 = jnp.float32
    H = params["lstm_whh"].shape[1]
    V = params["wout"].shape[0]
    E = params["embedding"].shape[1]
    Vp = _round_up(V, 128)

    wout_p = jnp.zeros((H, Vp), compute_dtype).at[:, :V].set(
        params["wout"].T.astype(compute_dtype))
    bout_p = jnp.zeros((1, Vp), f32).at[:, :V].set(
        params["bout"].reshape(1, V).astype(f32))

    return {
        "wfeat_t": params["wfeat"].T.astype(f32),                     # (C, E)
        "bfeat": params["bfeat"].astype(f32),                         # (E,)
        "embedding": params["embedding"].astype(f32),                 # (V, E)
        # PyTorch gate order [i, f, g, o] preserved along the 4H axis.
        "wih_4h": params["lstm_wih"].T.astype(compute_dtype),         # (E, 4H)
        "whh_4h": params["lstm_whh"].T.astype(compute_dtype),         # (H, 4H)
        "b_gate": (params["lstm_bih"] + params["lstm_bhh"]
                   ).reshape(1, -1).astype(f32),                      # (1, 4H)
        "wout_p": wout_p,                                             # (H, Vp)
        "bout_p": bout_p,                                             # (1, Vp)
        "E": E, "H": H, "V": V, "Vp": Vp,
        "compute_dtype": compute_dtype,
    }


# ---------------------------------------------------------------------------
# Forward: glue (pool + features_fc, teacher-forcing shift, embedding gather,
# batch padding) + the three pallas_calls.
# ---------------------------------------------------------------------------
def show_tell_forward(image_features, reports, prep):
    cd = prep["compute_dtype"]
    f32 = jnp.float32
    B = image_features.shape[0]
    T = reports.shape[1]
    E, H, V, Vp = prep["E"], prep["H"], prep["V"], prep["Vp"]
    Bp = _round_up(B, 8)                     # pad batch to a full sublane group

    # --- glue: adaptive avg-pool + features_fc (used once -> trivial for XLA)
    pooled = image_features.astype(f32).mean(axis=(2, 3))              # (B, C)
    img_vec = pooled @ prep["wfeat_t"] + prep["bfeat"]                 # (B, E)

    # --- glue: teacher-forcing input words + embedding gather (BN = identity)
    start = jnp.full((B, 1), START_IDX, dtype=reports.dtype)
    in_words = jnp.concatenate([start, reports[:, :-1]], axis=1)       # (B, T)
    emb = prep["embedding"][in_words]                                  # (B, T, E)

    # LSTM inputs for steps 0..T: image vector, then the T embedded words.
    x_seq = jnp.concatenate([img_vec[:, None, :], emb], axis=1)        # (B, T+1, E)
    x_seq = jnp.transpose(x_seq, (1, 0, 2))                            # (T+1, B, E)
    if Bp != B:
        x_seq = jnp.pad(x_seq, ((0, 0), (0, Bp - B), (0, 0)))          # (T+1, Bp, E)

    # --- Pallas 1: fused input/gate projection for all T+1 steps (parallel).
    xproj = pallas_linear(x_seq.reshape((T + 1) * Bp, E),
                          prep["wih_4h"], prep["b_gate"],
                          out_dtype=cd, compute_dtype=cd)
    xproj = xproj.reshape(T + 1, Bp, 4 * H)                            # cd, HBM

    # --- Pallas 2: sequential recurrence (single invocation, streamed xproj).
    hout = _run_recurrence(xproj, prep["whh_4h"], T, Bp, H, cd)        # (T, Bp, H)

    # --- Pallas 3: word_fc, batch-major output (no transpose of the logits).
    hs = jnp.transpose(hout, (1, 0, 2)).reshape(Bp * T, H)             # small tensor
    logits_p = pallas_linear(hs, prep["wout_p"], prep["bout_p"],
                             out_dtype=f32, compute_dtype=cd)          # (Bp*T, Vp)
    return logits_p.reshape(Bp, T, Vp)[:B, :, :V]                      # (B, T, V)


# ---------------------------------------------------------------------------
# Pure-JAX reference (mirrors the PyTorch forward) for correctness checks.
# ---------------------------------------------------------------------------
def reference_forward(image_features, reports, p):
    B = image_features.shape[0]
    T = reports.shape[1]
    H = p["lstm_whh"].shape[1]

    def lstm(x, h, c):
        gates = (x @ p["lstm_wih"].T + p["lstm_bih"]
                 + h @ p["lstm_whh"].T + p["lstm_bhh"])
        i, f, g, o = jnp.split(gates, 4, axis=-1)
        c2 = jax.nn.sigmoid(f) * c + jax.nn.sigmoid(i) * jnp.tanh(g)
        h2 = jax.nn.sigmoid(o) * jnp.tanh(c2)
        return h2, c2

    pooled = image_features.mean(axis=(2, 3))
    img_vec = pooled @ p["wfeat"].T + p["bfeat"]
    h, c = lstm(img_vec, jnp.zeros((B, H)), jnp.zeros((B, H)))

    next_words = jnp.full((B,), START_IDX, dtype=jnp.int32)
    outs = []
    for t in range(T):
        x = p["embedding"][next_words]
        h, c = lstm(x, h, c)
        pred = h @ p["wout"].T + p["bout"]
        outs.append(pred)
        next_words = reports[:, t]
    return jnp.stack(outs, axis=1)


if __name__ == "__main__":
    # Small shapes consistent with the module (H multiple of 128 -> lane-dense).
    B, C, Hs, Ws = 2, 16, 4, 4          # batch, features_size, spatial
    E, Hh, V, T = 64, 128, 32, 7        # embedding, hidden, vocab, seq len

    key = jax.random.PRNGKey(0)
    ks = jax.random.split(key, 10)

    params = {
        "wfeat":     0.1 * jax.random.normal(ks[0], (E, C), jnp.float32),
        "bfeat":     0.1 * jax.random.normal(ks[1], (E,), jnp.float32),
        "embedding": 0.1 * jax.random.normal(ks[2], (V, E), jnp.float32),
        "lstm_wih":  0.1 * jax.random.normal(ks[3], (4 * Hh, E), jnp.float32),
        "lstm_whh":  0.1 * jax.random.normal(ks[4], (4 * Hh, Hh), jnp.float32),
        "lstm_bih":  0.1 * jax.random.normal(ks[5], (4 * Hh,), jnp.float32),
        "lstm_bhh":  0.1 * jax.random.normal(ks[6], (4 * Hh,), jnp.float32),
        "wout":      0.1 * jax.random.normal(ks[7], (V, Hh), jnp.float32),
        "bout":      0.1 * jax.random.normal(ks[8], (V,), jnp.float32),
    }

    image_features = jax.random.normal(ks[9], (B, C, Hs, Ws), jnp.float32)
    reports = jax.random.randint(jax.random.PRNGKey(42), (B, T), 0, V, jnp.int32)

    ref = reference_forward(image_features, reports, params)

    # Exactness check: f32 compute path.
    prep_f32 = prepare_params(params, compute_dtype=jnp.float32)
    out_f32 = jax.block_until_ready(
        show_tell_forward(image_features, reports, prep_f32))
    assert out_f32.shape == (B, T, V), out_f32.shape
    assert jnp.allclose(out_f32, ref, atol=1e-4, rtol=1e-4), \
        f"f32 max err {jnp.max(jnp.abs(out_f32 - ref))}"

    # Performance path: bf16 matmul operands / intermediates, f32 accumulation
    # and f32 h/c state.
    prep_bf16 = prepare_params(params, compute_dtype=jnp.bfloat16)
    out_bf16 = jax.block_until_ready(
        show_tell_forward(image_features, reports, prep_bf16))
    assert out_bf16.shape == (B, T, V), out_bf16.shape
    assert jnp.allclose(out_bf16, ref, atol=5e-2, rtol=5e-2), \
        f"bf16 max err {jnp.max(jnp.abs(out_bf16 - ref))}"

    print("KERNEL_OK")
</pallas_src>

<mosaic_0001>
module attributes {stable_mosaic.version = 11 : i64} {
  func.func @_linear_kernel(%arg0: i32, %arg1: i32, %arg2: memref<64x64xf32, #tpu.memory_space<vmem>>, %arg3: memref<64x512xf32, #tpu.memory_space<vmem>>, %arg4: memref<1x512xf32, #tpu.memory_space<vmem>>, %arg5: memref<64x512xf32, #tpu.memory_space<vmem>>) attributes {dimension_semantics = [#tpu.dimension_semantics<parallel>, #tpu.dimension_semantics<parallel>], iteration_bounds = array<i64: 1, 1>, scalar_prefetch = 0 : i64, scratch_operands = 0 : i64, tpu.core_type = #tpu.core_type<tc>, window_params = [{transform_indices = @transform_0, window_bounds = array<i64: 64, 64>}, {transform_indices = @transform_1, window_bounds = array<i64: 64, 512>}, {transform_indices = @transform_2, window_bounds = array<i64: 1, 512>}, {transform_indices = @transform_3, window_bounds = array<i64: 64, 512>}]} {
    %c0 = arith.constant 0 : index
    %c0_0 = arith.constant 0 : index
    %0 = vector.load %arg2[%c0, %c0_0] : memref<64x64xf32, #tpu.memory_space<vmem>>, vector<64x64xf32>
    %c0_1 = arith.constant 0 : index
    %c0_2 = arith.constant 0 : index
    %1 = vector.load %arg3[%c0_1, %c0_2] : memref<64x512xf32, #tpu.memory_space<vmem>>, vector<64x512xf32>
    %cst = arith.constant dense<0.000000e+00> : vector<64x512xf32>
    %2 = tpu.matmul %0, %1, %cst {dimension_numbers = #tpu.dot_dimension_numbers<[1], [0], [0], [1], [0, 0, 1, 1], [], []>} : vector<64x64xf32>, vector<64x512xf32>, vector<64x512xf32> -> vector<64x512xf32>
    %c0_3 = arith.constant 0 : index
    %c0_4 = arith.constant 0 : index
    %3 = vector.load %arg4[%c0_3, %c0_4] : memref<1x512xf32, #tpu.memory_space<vmem>>, vector<1x512xf32>
    %4 = vector.broadcast %3 : vector<1x512xf32> to vector<64x512xf32>
    %5 = arith.addf %2, %4 : vector<64x512xf32>
    %c0_5 = arith.constant 0 : index
    %c0_6 = arith.constant 0 : index
    %6 = vector.load %arg5[%c0_5, %c0_6] : memref<64x512xf32, #tpu.memory_space<vmem>>, vector<64x512xf32>
    tpu.vector_store %arg5[%c0_5, %c0_6], %5 {strides = array<i32>} : memref<64x512xf32, #tpu.memory_space<vmem>>, vector<64x512xf32>,
    return
  }
  func.func @transform_0(%arg0: i32, %arg1: i32) -> (i32, i32) {
    %c0_i32 = arith.constant 0 : i32
    %c0_i32_0 = arith.constant 0 : i32
    return %arg0, %c0_i32 : i32, i32
  }
  func.func @transform_1(%arg0: i32, %arg1: i32) -> (i32, i32) {
    %c0_i32 = arith.constant 0 : i32
    %c0_i32_0 = arith.constant 0 : i32
    return %c0_i32, %arg1 : i32, i32
  }
  func.func @transform_2(%arg0: i32, %arg1: i32) -> (i32, i32) {
    %c0_i32 = arith.constant 0 : i32
    %c0_i32_0 = arith.constant 0 : i32
    return %c0_i32, %arg1 : i32, i32
  }
  func.func @transform_3(%arg0: i32, %arg1: i32) -> (i32, i32) {
    %c0_i32 = arith.constant 0 : i32
    return %arg0, %arg1 : i32, i32
  }
}

</mosaic_0001>

<llo_original>
// kernel: tpu_custom_call.1
$region0: #{tpu_custom_call.1}
  #allocation0 [shape = 'u32[]', space=smem, size = 0x4, offset = 0x4, fixed_abs, tag = 'smem constant byte address 0x4 - core index']
  #allocation1 [shape = 'u32[144,128]{1,0:T(1,128)}', space=vmem, size = 0x12000, scoped, tag = 'internal scratch']
  %s0 = inlined_call_operand.hbm [shape: f32[64,64], index: 0, kind: input, shape index: {}]
  %s1 = inlined_call_operand.hbm [shape: f32[64,512], index: 1, kind: input, shape index: {}]
  %s2 = inlined_call_operand.vmem [shape: f32[1,512], index: 2, kind: input, shape index: {}]
  %s3 = inlined_call_operand.hbm [shape: f32[64,512], index: 3, kind: output, shape index: {}]
  %s4 = sld [smem:[#allocation0]]
  $region30: #{tpu_custom_call.1} parent=0
    _
  %s6 = ssub.s32 1, %s4
  %s7 = scalar_select 0, %s6, %s4
  $region1: #{tpu_custom_call.1} parent=0
    #allocation2 [shape = 'u8[32768]{0}', space=vmem, size = 0x8000, scoped, tag = 'input window, operand 0, single buffered']
    #allocation3 [shape = 's32[1]{0}', space=sflag, size = 0x4, scoped, tag = 'scoped memory for tpu_custom_call.1']
    #allocation4 [shape = 's32[1]{0}', space=sflag, size = 0x4, scoped, tag = 'scoped memory for tpu_custom_call.1']
    #allocation5 [shape = 'u8[131072]{0}', space=vmem, size = 0x20000, scoped, tag = 'input window, operand 1, single buffered']
    #allocation6 [shape = 's32[1]{0}', space=sflag, size = 0x4, scoped, tag = 'scoped memory for tpu_custom_call.1']
    #allocation7 [shape = 'u8[131072]{0}', space=vmem, size = 0x20000, scoped, tag = 'output window, operand 0, single buffered']
    %8 = vsyncpa [#allocation3], 0
    %9 = vsyncpa [#allocation6], 0
    %10 = vsyncpa [#allocation4], 0
    // Predicated region
    $region2: #{tpu_custom_call.1} parent=1 // pred_check
      _
    $region3: #{tpu_custom_call.1} parent=1 // pred_check_branch
      %12 = sbr.rel (0) target = $region5
    $region4: #{tpu_custom_call.1} parent=1 // pred_region
      %s14 = ssub.s32 1024, 1024
      %15 = vsyncadd [#allocation3], %s14
      %s16 = sshll.u32 [#allocation2], 4
      %s17 = int_to_ptr.vmem [resolvable:$true] %s16
      %22 = dma.hbm_to_vmem [thread:$0]  %s0, 1024, %s17, [#allocation3], 128, 128, 8
    $region5: #{tpu_custom_call.1} parent=1 // pred_fallthru
      _
    // Predicated region
    $region6: #{tpu_custom_call.1} parent=1 // pred_check
      _
    $region7: #{tpu_custom_call.1} parent=1 // pred_check_branch
      %24 = sbr.rel (0) target = $region9
    $region8: #{tpu_custom_call.1} parent=1 // pred_region
      %s26 = ssub.s32 4096, 4096
      %27 = vsyncadd [#allocation6], %s26
      %s28 = sshll.u32 [#allocation5], 4
      %s29 = int_to_ptr.vmem [resolvable:$true] %s28
      %34 = dma.hbm_to_vmem [thread:$0]  %s1, 4096, %s29, [#allocation6], 512, 512, 32
    $region9: #{tpu_custom_call.1} parent=1 // pred_fallthru
      _
    // Predicated region
    $region10: #{tpu_custom_call.1} parent=1 // pred_check
      _
    $region11: #{tpu_custom_call.1} parent=1 // pred_check_branch
      %36 = sbr.rel (0) target = $region13
    $region12: #{tpu_custom_call.1} parent=1 // pred_region
      _
    $region13: #{tpu_custom_call.1} parent=1 // pred_fallthru
      _
    // Predicated region
    $region14: #{tpu_custom_call.1} parent=1 // pred_check
      _
    $region15: #{tpu_custom_call.1} parent=1 // pred_check_branch
      %38 = sbr.rel (0) target = $region17
    $region16: #{tpu_custom_call.1} parent=1 // pred_region
      %39 = dma.done [#allocation3], 1024
    $region17: #{tpu_custom_call.1} parent=1 // pred_fallthru
      _
    // Predicated region
    $region18: #{tpu_custom_call.1} parent=1 // pred_check
      _
    $region19: #{tpu_custom_call.1} parent=1 // pred_check_branch
      %41 = sbr.rel (0) target = $region21
    $region20: #{tpu_custom_call.1} parent=1 // pred_region
      %42 = dma.done [#allocation6], 4096
    $region21: #{tpu_custom_call.1} parent=1 // pred_fallthru
      _
    %v43 = vld [vmem:[#allocation2] sm:$0xff]
    %v44 = vld [vmem:[#allocation2 + $0x8] sm:$0xff]
    %v45 = vld [vmem:[#allocation2 + $0x10] sm:$0xff]
    %v46 = vld [vmem:[#allocation2 + $0x18] sm:$0xff]
    %v47 = vld [vmem:[#allocation2 + $0x20] sm:$0xff]
    %v48 = vld [vmem:[#allocation2 + $0x28] sm:$0xff]
    %v49 = vld [vmem:[#allocation2 + $0x30] sm:$0xff]
    %v50 = vld [vmem:[#allocation2 + $0x38] sm:$0xff]
    %v51 = vld [vmem:[#allocation5] sm:$0xff]
    %v52 = vld [vmem:[#allocation5 + $0x8] sm:$0xff]
    %v53 = vld [vmem:[#allocation5 + $0x10] sm:$0xff]
    %v54 = vld [vmem:[#allocation5 + $0x18] sm:$0xff]
    %v55 = vld [vmem:[#allocation5 + $0x20] sm:$0xff]
    %v56 = vld [vmem:[#allocation5 + $0x28] sm:$0xff]
    %v57 = vld [vmem:[#allocation5 + $0x30] sm:$0xff]
    %v58 = vld [vmem:[#allocation5 + $0x38] sm:$0xff]
    %v59 = vld [vmem:[#allocation5 + $0x40] sm:$0xff]
    %v60 = vld [vmem:[#allocation5 + $0x48] sm:$0xff]
    %v61 = vld [vmem:[#allocation5 + $0x50] sm:$0xff]
    %v62 = vld [vmem:[#allocation5 + $0x58] sm:$0xff]
    %v63 = vld [vmem:[#allocation5 + $0x60] sm:$0xff]
    %v64 = vld [vmem:[#allocation5 + $0x68] sm:$0xff]
    %v65 = vld [vmem:[#allocation5 + $0x70] sm:$0xff]
    %v66 = vld [vmem:[#allocation5 + $0x78] sm:$0xff]
    %v67 = vld [vmem:[#allocation5 + $0x80] sm:$0xff]
    %v68 = vld [vmem:[#allocation5 + $0x88] sm:$0xff]
    %v69 = vld [vmem:[#allocation5 + $0x90] sm:$0xff]
    %v70 = vld [vmem:[#allocation5 + $0x98] sm:$0xff]
    %v71 = vld [vmem:[#allocation5 + $0xa0] sm:$0xff]
    %v72 = vld [vmem:[#allocation5 + $0xa8] sm:$0xff]
    %v73 = vld [vmem:[#allocation5 + $0xb0] sm:$0xff]
    %v74 = vld [vmem:[#allocation5 + $0xb8] sm:$0xff]
    %v75 = vld [vmem:[#allocation5 + $0xc0] sm:$0xff]
    %v76 = vld [vmem:[#allocation5 + $0xc8] sm:$0xff]
    %v77 = vld [vmem:[#allocation5 + $0xd0] sm:$0xff]
    %v78 = vld [vmem:[#allocation5 + $0xd8] sm:$0xff]
    %v79 = vld [vmem:[#allocation5 + $0xe0] sm:$0xff]
    %v80 = vld [vmem:[#allocation5 + $0xe8] sm:$0xff]
    %v81 = vld [vmem:[#allocation5 + $0xf0] sm:$0xff]
    %v82 = vld [vmem:[#allocation5 + $0xf8] sm:$0xff]
    %v83 = vld [vmem:[%s2] sm:$0xf]
    %v85 = vlaneseq
    %v86 = vshrl.u32 %v85, 7
    %v87 = vsub.s32 0, %v86
    %v88 = vrot.slane %v83, %v87
    %v89 = vlaneseq
    %v90 = vshrl.u32 %v89, 7
    %v91 = vsub.s32 1, %v90
    %v92 = vrot.slane %v83, %v91
    %v93 = vlaneseq
    %v94 = vshrl.u32 %v93, 7
    %v95 = vsub.s32 2, %v94
    %v96 = vrot.slane %v83, %v95
    %v97 = vlaneseq
    %v98 = vshrl.u32 %v97, 7
    %v99 = vsub.s32 3, %v98
    %v100 = vrot.slane %v83, %v99
    %vm105 = vcmask 523264
    %v107 = vsel %vm105, %v43, 0
    %v110 = vsel %vm105, %v44, 0
    %v113 = vsel %vm105, %v45, 0
    %v116 = vsel %vm105, %v46, 0
    %v119 = vsel %vm105, %v47, 0
    %v122 = vsel %vm105, %v48, 0
    %v125 = vsel %vm105, %v49, 0
    %v128 = vsel %vm105, %v50, 0
    %130 = vmatprep.subr.mxu0 %v52
    %131 = vmatpush1.msra.mxu0 %v51
    %132 = vmatprep.subr.mxu0 %v56
    %133 = vmatpush1.msra.mxu0 %v55
    %134 = vmatprep.subr.mxu0 %v60
    %135 = vmatpush1.msra.mxu0 %v59
    %136 = vmatprep.subr.mxu0 %v64
    %137 = vmatpush1.msra.mxu0 %v63
    %138 = vmatprep.subr.mxu0 %v68
    %139 = vmatpush1.msra.mxu0 %v67
    %140 = vmatprep.subr.mxu0 %v72
    %141 = vmatpush1.msra.mxu0 %v71
    %142 = vmatprep.subr.mxu0 %v76
    %143 = vmatpush1.msra.mxu0 %v75
    %144 = vmatprep.subr.mxu0 %v80
    %145 = vmatpush1.msra.mxu0 %v79
    %146 = vmatprep.subr.mxu0 0.0
    %147 = vmatpush1.msra.mxu0 0.0
    %148 = vmatprep.subr.mxu0 0.0
    %149 = vmatpush1.msra.mxu0 0.0
    %150 = vmatprep.subr.mxu0 0.0
    %151 = vmatpush1.msra.mxu0 0.0
    %152 = vmatprep.subr.mxu0 0.0
    %153 = vmatpush1.msra.mxu0 0.0
    %154 = vmatprep.subr.mxu0 0.0
    %155 = vmatpush1.msra.mxu0 0.0
    %156 = vmatprep.subr.mxu0 0.0
    %157 = vmatpush1.msra.mxu0 0.0
    %158 = vmatprep.subr.mxu0 0.0
    %159 = vmatpush1.msra.mxu0 0.0
    %160 = vmatprep.subr.mxu0 0.0
    %161 = vmatpush1.msra.mxu0 0.0
    %162 = vmatprep.subr.mxu0 0.0
    %163 = vmatpush1.msra.mxu0 0.0
    %164 = vmatprep.subr.mxu0 0.0
    %165 = vmatpush1.msra.mxu0 0.0
    %166 = vmatprep.subr.mxu0 0.0
    %167 = vmatpush1.msra.mxu0 0.0
    %168 = vmatprep.subr.mxu0 0.0
    %169 = vmatpush1.msra.mxu0 0.0
    %170 = vmatprep.subr.mxu0 0.0
    %171 = vmatpush1.msra.mxu0 0.0
    %172 = vmatprep.subr.mxu0 0.0
    %173 = vmatpush1.msra.mxu0 0.0
    %174 = vmatprep.subr.mxu0 0.0
    %175 = vmatpush1.msra.mxu0 0.0
    %176 = vmatprep.subr.mxu0 0.0
    %177 = vmatpush1.msra.mxu0 0.0
    %178 = vmatprep.subr.mxu0 0.0
    %179 = vmatpush1.msra.mxu0 0.0
    %180 = vmatprep.subr.mxu0 0.0
    %181 = vmatpush1.msra.mxu0 0.0
    %182 = vmatprep.subr.mxu0 0.0
    %183 = vmatpush1.msra.mxu0 0.0
    %184 = vmatprep.subr.mxu0 0.0
    %185 = vmatpush1.msra.mxu0 0.0
    %186 = vmatprep.subr.mxu0 0.0
    %187 = vmatpush1.msra.mxu0 0.0
    %188 = vmatprep.subr.mxu0 0.0
    %189 = vmatpush1.msra.mxu0 0.0
    %190 = vmatprep.subr.mxu0 0.0
    %191 = vmatpush1.msra.mxu0 0.0
    %192 = vmatprep.subr.mxu0 0.0
    %193 = vmatpush1.msra.mxu0 0.0
    %194 = vmatprep.mubr.f32.mxu0 0.0
    %195 = vmatmul.mubr.f32.gmra.mrb[0].mxu0 %v107
    %v196 = vpop.f32.mrb[0].mxu0
    %v197 = vadd.f32 %v88, %v196
    %v198 = vpop.f32.mrb[0].mxu0
    %v199 = vadd.f32 %v92, %v198
    %200 = vmatprep.mubr.f32.mxu0 0.0
    %201 = vmatmul.mubr.f32.gmra.mrb[0].mxu0 %v110
    %v202 = vpop.f32.mrb[0].mxu0
    %v203 = vadd.f32 %v88, %v202
    %v204 = vpop.f32.mrb[0].mxu0
    %v205 = vadd.f32 %v92, %v204
    %206 = vmatprep.mubr.f32.mxu0 0.0
    %207 = vmatmul.mubr.f32.gmra.mrb[0].mxu0 %v113
    %v208 = vpop.f32.mrb[0].mxu0
    %v209 = vadd.f32 %v88, %v208
    %v210 = vpop.f32.mrb[0].mxu0
    %v211 = vadd.f32 %v92, %v210
    %212 = vmatprep.mubr.f32.mxu0 0.0
    %213 = vmatmul.mubr.f32.gmra.mrb[0].mxu0 %v116
    %v214 = vpop.f32.mrb[0].mxu0
    %v215 = vadd.f32 %v88, %v214
    %v216 = vpop.f32.mrb[0].mxu0
    %v217 = vadd.f32 %v92, %v216
    %218 = vmatprep.mubr.f32.mxu0 0.0
    %219 = vmatmul.mubr.f32.gmra.mrb[0].mxu0 %v119
    %v220 = vpop.f32.mrb[0].mxu0
    %v221 = vadd.f32 %v88, %v220
    %v222 = vpop.f32.mrb[0].mxu0
    %v223 = vadd.f32 %v92, %v222
    %224 = vmatprep.mubr.f32.mxu0 0.0
    %225 = vmatmul.mubr.f32.gmra.mrb[0].mxu0 %v122
    %v226 = vpop.f32.mrb[0].mxu0
    %v227 = vadd.f32 %v88, %v226
    %v228 = vpop.f32.mrb[0].mxu0
    %v229 = vadd.f32 %v92, %v228
    %230 = vmatprep.mubr.f32.mxu0 0.0
    %231 = vmatmul.mubr.f32.gmra.mrb[0].mxu0 %v125
    %v232 = vpop.f32.mrb[0].mxu0
    %v233 = vadd.f32 %v88, %v232
    %v234 = vpop.f32.mrb[0].mxu0
    %v235 = vadd.f32 %v92, %v234
    %236 = vmatprep.mubr.f32.mxu0 0.0
    %237 = vmatmul.mubr.f32.gmra.mrb[0].mxu0 %v128
    %v238 = vpop.f32.mrb[0].mxu0
    %v239 = vadd.f32 %v88, %v238
    %v240 = vpop.f32.mrb[0].mxu0
    %v241 = vadd.f32 %v92, %v240
    %242 = vdwg.mxu0
    %243 = vmatprep.subr.mxu0 %v54
    %244 = vmatpush1.msra.mxu0 %v53
    %245 = vmatprep.subr.mxu0 %v58
    %246 = vmatpush1.msra.mxu0 %v57
    %247 = vmatprep.subr.mxu0 %v62
    %248 = vmatpush1.msra.mxu0 %v61
    %249 = vmatprep.subr.mxu0 %v66
    %250 = vmatpush1.msra.mxu0 %v65
    %251 = vmatprep.subr.mxu0 %v70
    %252 = vmatpush1.msra.mxu0 %v69
    %253 = vmatprep.subr.mxu0 %v74
    %254 = vmatpush1.msra.mxu0 %v73
    %255 = vmatprep.subr.mxu0 %v78
    %256 = vmatpush1.msra.mxu0 %v77
    %257 = vmatprep.subr.mxu0 %v82
    %258 = vmatpush1.msra.mxu0 %v81
    %259 = vmatprep.subr.mxu0 0.0
    %260 = vmatpush1.msra.mxu0 0.0
    %261 = vmatprep.subr.mxu0 0.0
    %262 = vmatpush1.msra.mxu0 0.0
    %263 = vmatprep.subr.mxu0 0.0
    %264 = vmatpush1.msra.mxu0 0.0
    %265 = vmatprep.subr.mxu0 0.0
    %266 = vmatpush1.msra.mxu0 0.0
    %267 = vmatprep.subr.mxu0 0.0
    %268 = vmatpush1.msra.mxu0 0.0
    %269 = vmatprep.subr.mxu0 0.0
    %270 = vmatpush1.msra.mxu0 0.0
    %271 = vmatprep.subr.mxu0 0.0
    %272 = vmatpush1.msra.mxu0 0.0
    %273 = vmatprep.subr.mxu0 0.0
    %274 = vmatpush1.msra.mxu0 0.0
    %275 = vmatprep.subr.mxu0 0.0
    %276 = vmatpush1.msra.mxu0 0.0
    %277 = vmatprep.subr.mxu0 0.0
    %278 = vmatpush1.msra.mxu0 0.0
    %279 = vmatprep.subr.mxu0 0.0
    %280 = vmatpush1.msra.mxu0 0.0
    %281 = vmatprep.subr.mxu0 0.0
    %282 = vmatpush1.msra.mxu0 0.0
    %283 = vmatprep.subr.mxu0 0.0
    %284 = vmatpush1.msra.mxu0 0.0
    %285 = vmatprep.subr.mxu0 0.0
    %286 = vmatpush1.msra.mxu0 0.0
    %287 = vmatprep.subr.mxu0 0.0
    %288 = vmatpush1.msra.mxu0 0.0
    %289 = vmatprep.subr.mxu0 0.0
    %290 = vmatpush1.msra.mxu0 0.0
    %291 = vmatprep.subr.mxu0 0.0
    %292 = vmatpush1.msra.mxu0 0.0
    %293 = vmatprep.subr.mxu0 0.0
    %294 = vmatpush1.msra.mxu0 0.0
    %295 = vmatprep.subr.mxu0 0.0
    %296 = vmatpush1.msra.mxu0 0.0
    %297 = vmatprep.subr.mxu0 0.0
    %298 = vmatpush1.msra.mxu0 0.0
    %299 = vmatprep.subr.mxu0 0.0
    %300 = vmatpush1.msra.mxu0 0.0
    %301 = vmatprep.subr.mxu0 0.0
    %302 = vmatpush1.msra.mxu0 0.0
    %303 = vmatprep.subr.mxu0 0.0
    %304 = vmatpush1.msra.mxu0 0.0
    %305 = vmatprep.subr.mxu0 0.0
    %306 = vmatpush1.msra.mxu0 0.0
    %307 = vmatprep.mubr.f32.mxu0 0.0
    %308 = vmatmul.mubr.f32.gmra.mrb[0].mxu0 %v107
    %v309 = vpop.f32.mrb[0].mxu0
    %v310 = vadd.f32 %v96, %v309
    %v311 = vpop.f32.mrb[0].mxu0
    %v312 = vadd.f32 %v100, %v311
    %313 = vmatprep.mubr.f32.mxu0 0.0
    %314 = vmatmul.mubr.f32.gmra.mrb[0].mxu0 %v110
    %v315 = vpop.f32.mrb[0].mxu0
    %v316 = vadd.f32 %v96, %v315
    %v317 = vpop.f32.mrb[0].mxu0
    %v318 = vadd.f32 %v100, %v317
    %319 = vmatprep.mubr.f32.mxu0 0.0
    %320 = vmatmul.mubr.f32.gmra.mrb[0].mxu0 %v113
    %v321 = vpop.f32.mrb[0].mxu0
    %v322 = vadd.f32 %v96, %v321
    %v323 = vpop.f32.mrb[0].mxu0
    %v324 = vadd.f32 %v100, %v323
    %325 = vmatprep.mubr.f32.mxu0 0.0
    %326 = vmatmul.mubr.f32.gmra.mrb[0].mxu0 %v116
    %v327 = vpop.f32.mrb[0].mxu0
    %v328 = vadd.f32 %v96, %v327
    %v329 = vpop.f32.mrb[0].mxu0
    %v330 = vadd.f32 %v100, %v329
    %331 = vmatprep.mubr.f32.mxu0 0.0
    %332 = vmatmul.mubr.f32.gmra.mrb[0].mxu0 %v119
    %v333 = vpop.f32.mrb[0].mxu0
    %v334 = vadd.f32 %v96, %v333
    %v335 = vpop.f32.mrb[0].mxu0
    %v336 = vadd.f32 %v100, %v335
    %337 = vmatprep.mubr.f32.mxu0 0.0
    %338 = vmatmul.mubr.f32.gmra.mrb[0].mxu0 %v122
    %v339 = vpop.f32.mrb[0].mxu0
    %v340 = vadd.f32 %v96, %v339
    %v341 = vpop.f32.mrb[0].mxu0
    %v342 = vadd.f32 %v100, %v341
    %343 = vmatprep.mubr.f32.mxu0 0.0
    %344 = vmatmul.mubr.f32.gmra.mrb[0].mxu0 %v125
    %v345 = vpop.f32.mrb[0].mxu0
    %v346 = vadd.f32 %v96, %v345
    %v347 = vpop.f32.mrb[0].mxu0
    %v348 = vadd.f32 %v100, %v347
    %349 = vmatprep.mubr.f32.mxu0 0.0
    %350 = vmatmul.mubr.f32.gmra.mrb[0].mxu0 %v128
    %v351 = vpop.f32.mrb[0].mxu0
    %v352 = vadd.f32 %v96, %v351
    %v353 = vpop.f32.mrb[0].mxu0
    %v354 = vadd.f32 %v100, %v353
    %355 = vdwg.mxu0
    %356 = vst [vmem:[#allocation7] sm:$0xff] %v197
    %357 = vst [vmem:[#allocation7 + $0x8] sm:$0xff] %v199
    %358 = vst [vmem:[#allocation7 + $0x10] sm:$0xff] %v310
    %359 = vst [vmem:[#allocation7 + $0x18] sm:$0xff] %v312
    %360 = vst [vmem:[#allocation7 + $0x20] sm:$0xff] %v203
    %361 = vst [vmem:[#allocation7 + $0x28] sm:$0xff] %v205
    %362 = vst [vmem:[#allocation7 + $0x30] sm:$0xff] %v316
    %363 = vst [vmem:[#allocation7 + $0x38] sm:$0xff] %v318
    %364 = vst [vmem:[#allocation7 + $0x40] sm:$0xff] %v209
    %365 = vst [vmem:[#allocation7 + $0x48] sm:$0xff] %v211
    %366 = vst [vmem:[#allocation7 + $0x50] sm:$0xff] %v322
    %367 = vst [vmem:[#allocation7 + $0x58] sm:$0xff] %v324
    %368 = vst [vmem:[#allocation7 + $0x60] sm:$0xff] %v215
    %369 = vst [vmem:[#allocation7 + $0x68] sm:$0xff] %v217
    %370 = vst [vmem:[#allocation7 + $0x70] sm:$0xff] %v328
    %371 = vst [vmem:[#allocation7 + $0x78] sm:$0xff] %v330
    %372 = vst [vmem:[#allocation7 + $0x80] sm:$0xff] %v221
    %373 = vst [vmem:[#allocation7 + $0x88] sm:$0xff] %v223
    %374 = vst [vmem:[#allocation7 + $0x90] sm:$0xff] %v334
    %375 = vst [vmem:[#allocation7 + $0x98] sm:$0xff] %v336
    %376 = vst [vmem:[#allocation7 + $0xa0] sm:$0xff] %v227
    %377 = vst [vmem:[#allocation7 + $0xa8] sm:$0xff] %v229
    %378 = vst [vmem:[#allocation7 + $0xb0] sm:$0xff] %v340
    %379 = vst [vmem:[#allocation7 + $0xb8] sm:$0xff] %v342
    %380 = vst [vmem:[#allocation7 + $0xc0] sm:$0xff] %v233
    %381 = vst [vmem:[#allocation7 + $0xc8] sm:$0xff] %v235
    %382 = vst [vmem:[#allocation7 + $0xd0] sm:$0xff] %v346
    %383 = vst [vmem:[#allocation7 + $0xd8] sm:$0xff] %v348
    %384 = vst [vmem:[#allocation7 + $0xe0] sm:$0xff] %v239
    %385 = vst [vmem:[#allocation7 + $0xe8] sm:$0xff] %v241
    %386 = vst [vmem:[#allocation7 + $0xf0] sm:$0xff] %v352
    %387 = vst [vmem:[#allocation7 + $0xf8] sm:$0xff] %v354
    // Predicated region
    $region22: #{tpu_custom_call.1} parent=1 // pred_check
      _
    $region23: #{tpu_custom_call.1} parent=1 // pred_check_branch
      %389 = sbr.rel (0) target = $region25
    $region24: #{tpu_custom_call.1} parent=1 // pred_region
      %s391 = ssub.s32 4096, 4096
      %392 = vsyncadd [#allocation4], %s391
      %s393 = sshll.u32 [#allocation7], 4
      %s394 = int_to_ptr.vmem [resolvable:$true] %s393
      %399 = dma.vmem_to_hbm [thread:$0]  %s394, 4096, %s3, [#allocation4], 512, 512, 32
    $region25: #{tpu_custom_call.1} parent=1 // pred_fallthru
      _
    // Predicated region
    $region26: #{tpu_custom_call.1} parent=1 // pred_check
      _
    $region27: #{tpu_custom_call.1} parent=1 // pred_check_branch
      %401 = sbr.rel (0) target = $region29
    $region28: #{tpu_custom_call.1} parent=1 // pred_region
      %402 = dma.done [#allocation4], 4096
    $region29: #{tpu_custom_call.1} parent=1 // pred_fallthru
      _
    %403 = vsyncpa [#allocation3], 1
    %404 = vsyncpa [#allocation6], 1
    %405 = vsyncpa [#allocation4], 1

</llo_original>
